<compile_context>
chip_gen: v6e
topology: v6e:2x2x1
jax: 0.10.0
libtpu: 0.0.40
codegen_flags: <defaults>
</compile_context>

<pallas_src>
import jax
import jax.numpy as jnp
from jax import lax
from jax.experimental import pallas as pl
from jax.experimental.pallas import tpu as pltpu

_LANES = 128


def critic_kernel(rl_ref, wslab_ref, edges_ref, out_ref):
    n, d2 = rl_ref.shape            # N nodes, 2*D features (role || llm)
    e = edges_ref.shape[1]          # padded edge count (lane axis)

    # ---- packed weight slab (every row 128 lanes wide; padding lanes are exact zeros) ----
    w_enc = wslab_ref[0:d2, :]               # (2D, 128) rql_encoder weight for role||llm
    b_eff = wslab_ref[d2:d2 + 1, :]          # (1, 128)  bias + query @ W_q  (per-graph constant)
    w_gh  = wslab_ref[d2 + 1:d2 + 2, :]      # (1, 128)  w_head @ w_gcn^T    (head folded into GCN)
    c     = wslab_ref[d2 + 2:d2 + 3, 0:1]    # (1, 1)    b_gcn @ w_head^T + b_head

    # ---- rql_encoder, fused to a single MXU matmul (query term folded into b_eff) ----
    enc = jnp.dot(rl_ref[...], w_enc, preferred_element_type=jnp.float32) + b_eff   # (N, 128)

    # ---- F.normalize(p=2, dim=-1, eps=1e-12):  x * rsqrt(max(sum x^2, 1e-24)) ----
    sumsq = jnp.sum(enc * enc, axis=-1, keepdims=True)
    enc = enc * lax.rsqrt(jnp.maximum(sumsq, 1e-24))

    # ---- head folded through the GCN weight: t = enc @ (w_gcn @ w_head^T)  -> (N, 1) ----
    t = jnp.sum(enc * w_gh, axis=-1, keepdims=True)

    # ---- edges: lane-dense (N, E) one-hot masks (padded edges carry weight 0) ----
    src = edges_ref[0:1, :]                                    # (1, E) int32
    dst = edges_ref[1:2, :]                                    # (1, E) int32
    ew  = pltpu.bitcast(edges_ref[2:3, :], jnp.float32)        # (1, E) f32
    node_ids = lax.broadcasted_iota(jnp.int32, (n, e), 0)      # (N, E)
    s_hot  = (node_ids == src).astype(jnp.float32)             # (N, E)
    dw_hot = (node_ids == dst).astype(jnp.float32) * ew        # (N, E) weighted dst one-hot

    # ---- GCN symmetric normalization: in-degree (incl. the +1 self loop) straight from dw_hot ----
    deg  = jnp.sum(dw_hot, axis=-1, keepdims=True) + 1.0       # (N, 1)
    dinv = jnp.where(deg > 0.0, lax.rsqrt(deg), 0.0)           # (N, 1)

    # ---- aggregation, adjacency never materialized:
    #   agg[j] = sum_e ew[e]*[dst[e]==j]*dinv[src[e]]*t[src[e]] + dinv[j]*t[j]   (self loop)
    st  = dinv * t                                             # (N, 1)
    v   = jnp.sum(s_hot * st, axis=0, keepdims=True)           # (1, E) = dinv[src[e]]*t[src[e]]
    agg = jnp.sum(dw_hot * v, axis=-1, keepdims=True) + st     # (N, 1)

    # ---- mean over nodes + folded head bias ----
    out_ref[...] = jnp.sum(dinv * agg, axis=0, keepdims=True) * (1.0 / n) + c


def critic_forward(params, query, role, llm, edge_index, edge_weight):
    n, d = role.shape
    e = edge_index.shape[1]
    e_pad = max(_LANES, ((e + _LANES - 1) // _LANES) * _LANES)
    pad = e_pad - e

    def lane_pad(x):  # pad last dim to a full 128-lane row block
        return jnp.pad(x.astype(jnp.float32), ((0, 0), (0, _LANES - x.shape[-1])))

    # --- input 1: node features role||llm, (N, 2D) ---
    rl = jnp.concatenate([role, llm], axis=-1).astype(jnp.float32)

    # --- input 2: ONE packed weight slab (2D+3, 128) ---
    b_eff = jnp.dot(query, params["w_enc_q"]) + params["b_enc"]            # (1, D)
    w_gh = jnp.dot(params["w_head"], params["w_gcn"].T)                    # (1, D)
    c = jnp.dot(params["b_gcn"], params["w_head"].T) + params["b_head"]    # (1, 1)
    wslab = jnp.concatenate(
        [lane_pad(params["w_enc_rl"]), lane_pad(b_eff), lane_pad(w_gh), lane_pad(c)], axis=0)

    # --- input 3: ONE packed edge array (3, E_pad) int32, E on the lane axis ---
    src = jnp.pad(edge_index[0].astype(jnp.int32), (0, pad))
    dst = jnp.pad(edge_index[1].astype(jnp.int32), (0, pad))
    ew_bits = lax.bitcast_convert_type(
        jnp.pad(edge_weight.astype(jnp.float32), (0, pad)), jnp.int32)
    edges = jnp.stack([src, dst, ew_bits], axis=0)                          # (3, E_pad)

    out = pl.pallas_call(
        critic_kernel,
        out_shape=jax.ShapeDtypeStruct((1, 1), jnp.float32),
        in_specs=[pl.BlockSpec(memory_space=pltpu.MemorySpace.VMEM)] * 3,
        out_specs=pl.BlockSpec(memory_space=pltpu.MemorySpace.VMEM),
        # actual footprint is ~100 KB; keep an explicit but right-sized scoped-VMEM limit
        compiler_params=pltpu.CompilerParams(vmem_limit_bytes=4 * 1024 * 1024),
    )(rl, wslab, edges)
    return out.reshape(1)   # torch: .squeeze(-1)  -> shape (1,)


def reference_forward(params, query, role, llm, edge_index, edge_weight):
    # Unfused pure-JAX reference (also validates the algebraic head fold in the kernel).
    n = role.shape[0]
    rql = jnp.concatenate([role, llm, jnp.broadcast_to(query, (n, query.shape[-1]))], axis=-1)
    w_enc = jnp.concatenate([params["w_enc_rl"], params["w_enc_q"]], axis=0)
    enc = rql @ w_enc + params["b_enc"]
    enc = enc / jnp.maximum(jnp.linalg.norm(enc, axis=-1, keepdims=True), 1e-12)
    xw = enc @ params["w_gcn"]
    A = jnp.zeros((n, n), jnp.float32).at[edge_index[0], edge_index[1]].add(edge_weight)
    A = A + jnp.eye(n, dtype=jnp.float32)
    deg = A.sum(axis=0)
    dinv = jnp.where(deg > 0, 1.0 / jnp.sqrt(deg), 0.0)
    A_norm = dinv[:, None] * A * dinv[None, :]
    g = A_norm.T @ xw + params["b_gcn"]
    g_mean = g.mean(axis=0, keepdims=True)
    return (jnp.sum(g_mean * params["w_head"], axis=-1, keepdims=True) + params["b_head"]).reshape(1)


def init_params(key, embed_dim, hidden_dim):
    ks = jax.random.split(key, 6)
    d, h = embed_dim, hidden_dim
    w_enc = jax.random.normal(ks[0], (3 * d, d), jnp.float32) * 0.1   # (in, out) layout
    return {
        "w_enc_rl": w_enc[:2 * d],          # (2D, D)  role||llm block of rql_encoder weight
        "w_enc_q":  w_enc[2 * d:],          # (D, D)   query block (folded into bias per graph)
        "b_enc":    jax.random.normal(ks[1], (1, d), jnp.float32) * 0.1,
        "w_gcn":    jax.random.normal(ks[2], (d, h), jnp.float32) * 0.1,
        "b_gcn":    jax.random.normal(ks[3], (1, h), jnp.float32) * 0.1,
        "w_head":   jax.random.normal(ks[4], (1, h), jnp.float32) * 0.1,  # row vec of Linear(H,1)
        "b_head":   jax.random.normal(ks[5], (1, 1), jnp.float32) * 0.1,
    }


if __name__ == "__main__":
    EMBED_DIM, HIDDEN_DIM = 32, 32
    N_NODES, N_EDGES = 8, 12

    key = jax.random.PRNGKey(0)
    k_q, k_r, k_l, k_ei, k_ej, k_ew, k_p = jax.random.split(key, 7)

    query = jax.random.normal(k_q, (1, EMBED_DIM), jnp.float32)
    role  = jax.random.normal(k_r, (N_NODES, EMBED_DIM), jnp.float32)
    llm   = jax.random.normal(k_l, (N_NODES, EMBED_DIM), jnp.float32)

    src = jax.random.randint(k_ei, (N_EDGES,), 0, N_NODES)
    off = jax.random.randint(k_ej, (N_EDGES,), 1, N_NODES)
    dst = (src + off) % N_NODES                      # no explicit self loops in the edge list
    edge_index = jnp.stack([src, dst], axis=0).astype(jnp.int32)   # (2, E)
    edge_weight = jax.random.uniform(k_ew, (N_EDGES,), jnp.float32, 0.1, 1.0)

    params = init_params(k_p, EMBED_DIM, HIDDEN_DIM)

    out = critic_forward(params, query, role, llm, edge_index, edge_weight)
    out = jax.block_until_ready(out)

    ref = reference_forward(params, query, role, llm, edge_index, edge_weight)
    assert out.shape == (1,)
    assert jnp.allclose(out, ref, rtol=1e-3, atol=1e-4), (out, ref)

    print("KERNEL_OK")
</pallas_src>

<mosaic_0001>
module attributes {stable_mosaic.version = 11 : i64} {
  func.func @critic_kernel(%arg0: memref<8x64xf32, #tpu.memory_space<vmem>>, %arg1: memref<67x128xf32, #tpu.memory_space<vmem>>, %arg2: memref<3x128xi32, #tpu.memory_space<vmem>>, %arg3: memref<1x1xf32, #tpu.memory_space<vmem>>) attributes {dimension_semantics = [], scalar_prefetch = 0 : i64, scratch_operands = 0 : i64, tpu.core_type = #tpu.core_type<tc>} {
    %c0 = arith.constant 0 : index
    %c0_0 = arith.constant 0 : index
    %0 = vector.load %arg1[%c0, %c0_0] : memref<67x128xf32, #tpu.memory_space<vmem>>, vector<64x128xf32>
    %c64 = arith.constant 64 : index
    %c0_1 = arith.constant 0 : index
    %1 = vector.load %arg1[%c64, %c0_1] : memref<67x128xf32, #tpu.memory_space<vmem>>, vector<1x128xf32>
    %c65 = arith.constant 65 : index
    %c0_2 = arith.constant 0 : index
    %2 = vector.load %arg1[%c65, %c0_2] : memref<67x128xf32, #tpu.memory_space<vmem>>, vector<1x128xf32>
    %c66 = arith.constant 66 : index
    %c0_3 = arith.constant 0 : index
    %3 = vector.load %arg1[%c66, %c0_3] : memref<67x128xf32, #tpu.memory_space<vmem>>, vector<1x1xf32>
    %c0_4 = arith.constant 0 : index
    %c0_5 = arith.constant 0 : index
    %4 = vector.load %arg0[%c0_4, %c0_5] : memref<8x64xf32, #tpu.memory_space<vmem>>, vector<8x64xf32>
    %cst = arith.constant dense<0.000000e+00> : vector<8x128xf32>
    %5 = tpu.matmul %4, %0, %cst {dimension_numbers = #tpu.dot_dimension_numbers<[1], [0], [0], [1], [0, 0, 1, 1], [], []>} : vector<8x64xf32>, vector<64x128xf32>, vector<8x128xf32> -> vector<8x128xf32>
    %6 = vector.broadcast %1 : vector<1x128xf32> to vector<8x128xf32>
    %7 = arith.addf %5, %6 : vector<8x128xf32>
    %8 = arith.mulf %7, %7 : vector<8x128xf32>
    %cst_6 = arith.constant dense<0.000000e+00> : vector<8xf32>
    %9 = vector.multi_reduction <add>, %8, %cst_6 [1] : vector<8x128xf32> to vector<8xf32>
    %10 = vector.shape_cast %9 : vector<8xf32> to vector<8x1xf32>
    %cst_7 = arith.constant 1.000000e-24 : f32
    %11 = vector.broadcast %cst_7 : f32 to vector<8x1xf32>
    %12 = arith.maximumf %10, %11 : vector<8x1xf32>
    %13 = math.rsqrt %12 : vector<8x1xf32>
    %14 = vector.broadcast %13 : vector<8x1xf32> to vector<8x128xf32>
    %15 = arith.mulf %7, %14 : vector<8x128xf32>
    %16 = vector.broadcast %2 : vector<1x128xf32> to vector<8x128xf32>
    %17 = arith.mulf %15, %16 : vector<8x128xf32>
    %cst_8 = arith.constant dense<0.000000e+00> : vector<8xf32>
    %18 = vector.multi_reduction <add>, %17, %cst_8 [1] : vector<8x128xf32> to vector<8xf32>
    %19 = vector.shape_cast %18 : vector<8xf32> to vector<8x1xf32>
    %c0_9 = arith.constant 0 : index
    %c0_10 = arith.constant 0 : index
    %20 = vector.load %arg2[%c0_9, %c0_10] : memref<3x128xi32, #tpu.memory_space<vmem>>, vector<1x128xi32>
    %c1 = arith.constant 1 : index
    %c0_11 = arith.constant 0 : index
    %21 = vector.load %arg2[%c1, %c0_11] : memref<3x128xi32, #tpu.memory_space<vmem>>, vector<1x128xi32>
    %c2 = arith.constant 2 : index
    %c0_12 = arith.constant 0 : index
    %22 = vector.load %arg2[%c2, %c0_12] : memref<3x128xi32, #tpu.memory_space<vmem>>, vector<1x128xi32>
    %23 = tpu.bitcast %22 : vector<1x128xi32> -> vector<1x128xf32>
    %24 = tpu.iota {dimensions = array<i32: 0>} : vector<8x128xi32>
    %25 = vector.broadcast %20 : vector<1x128xi32> to vector<8x128xi32>
    %26 = arith.cmpi eq, %24, %25 : vector<8x128xi32>
    %27 = arith.extui %26 : vector<8x128xi1> to vector<8x128xi32>
    %28 = arith.sitofp %27 : vector<8x128xi32> to vector<8x128xf32>
    %29 = vector.broadcast %21 : vector<1x128xi32> to vector<8x128xi32>
    %30 = arith.cmpi eq, %24, %29 : vector<8x128xi32>
    %31 = arith.extui %30 : vector<8x128xi1> to vector<8x128xi32>
    %32 = arith.sitofp %31 : vector<8x128xi32> to vector<8x128xf32>
    %33 = vector.broadcast %23 : vector<1x128xf32> to vector<8x128xf32>
    %34 = arith.mulf %32, %33 : vector<8x128xf32>
    %cst_13 = arith.constant dense<0.000000e+00> : vector<8xf32>
    %35 = vector.multi_reduction <add>, %34, %cst_13 [1] : vector<8x128xf32> to vector<8xf32>
    %36 = vector.shape_cast %35 : vector<8xf32> to vector<8x1xf32>
    %cst_14 = arith.constant 1.000000e+00 : f32
    %37 = vector.broadcast %cst_14 : f32 to vector<8x1xf32>
    %38 = arith.addf %36, %37 : vector<8x1xf32>
    %cst_15 = arith.constant 0.000000e+00 : f32
    %39 = vector.broadcast %cst_15 : f32 to vector<8x1xf32>
    %40 = arith.cmpf ogt, %38, %39 : vector<8x1xf32>
    %41 = math.rsqrt %38 : vector<8x1xf32>
    %cst_16 = arith.constant 0.000000e+00 : f32
    %42 = vector.broadcast %cst_16 : f32 to vector<8x1xf32>
    %43 = arith.select %40, %41, %42 : vector<8x1xi1>, vector<8x1xf32>
    %44 = arith.mulf %43, %19 : vector<8x1xf32>
    %45 = vector.broadcast %44 : vector<8x1xf32> to vector<8x128xf32>
    %46 = arith.mulf %28, %45 : vector<8x128xf32>
    %cst_17 = arith.constant dense<0.000000e+00> : vector<128xf32>
    %47 = vector.multi_reduction <add>, %46, %cst_17 [0] : vector<8x128xf32> to vector<128xf32>
    %48 = vector.shape_cast %47 : vector<128xf32> to vector<1x128xf32>
    %49 = vector.broadcast %48 : vector<1x128xf32> to vector<8x128xf32>
    %50 = arith.mulf %34, %49 : vector<8x128xf32>
    %cst_18 = arith.constant dense<0.000000e+00> : vector<8xf32>
    %51 = vector.multi_reduction <add>, %50, %cst_18 [1] : vector<8x128xf32> to vector<8xf32>
    %52 = vector.shape_cast %51 : vector<8xf32> to vector<8x1xf32>
    %53 = arith.addf %52, %44 : vector<8x1xf32>
    %54 = arith.mulf %43, %53 : vector<8x1xf32>
    %cst_19 = arith.constant dense<0.000000e+00> : vector<1xf32>
    %55 = vector.multi_reduction <add>, %54, %cst_19 [0] : vector<8x1xf32> to vector<1xf32>
    %56 = vector.shape_cast %55 : vector<1xf32> to vector<1x1xf32>
    %cst_20 = arith.constant 1.250000e-01 : f32
    %57 = vector.broadcast %cst_20 : f32 to vector<1x1xf32>
    %58 = arith.mulf %56, %57 : vector<1x1xf32>
    %59 = arith.addf %58, %3 : vector<1x1xf32>
    %c0_21 = arith.constant 0 : index
    %c0_22 = arith.constant 0 : index
    %60 = vector.load %arg3[%c0_21, %c0_22] : memref<1x1xf32, #tpu.memory_space<vmem>>, vector<1x1xf32>
    tpu.vector_store %arg3[%c0_21, %c0_22], %59 {strides = array<i32>} : memref<1x1xf32, #tpu.memory_space<vmem>>, vector<1x1xf32>,
    return
  }
}

</mosaic_0001>

<llo_original>
// kernel: tpu_custom_call.1
$region0: #{tpu_custom_call.1}
  #allocation0 [shape = 'u32[]', space=smem, size = 0x4, offset = 0x4, fixed_abs, tag = 'smem constant byte address 0x4 - core index']
  #allocation1 [shape = 'u32[144,128]{1,0:T(1,128)}', space=vmem, size = 0x12000, scoped, tag = 'internal scratch']
  %s0 = inlined_call_operand.hbm [shape: f32[8,64], index: 0, kind: input, shape index: {}]
  %s1 = inlined_call_operand.hbm [shape: f32[67,128], index: 1, kind: input, shape index: {}]
  %s2 = inlined_call_operand.hbm [shape: s32[3,128], index: 2, kind: input, shape index: {}]
  %s3 = inlined_call_operand.hbm [shape: f32[1,1], index: 3, kind: output, shape index: {}]
  %s4 = sld [smem:[#allocation0]]
  $region34: #{tpu_custom_call.1} parent=0
    _
  %s6 = ssub.s32 1, %s4
  %s7 = scalar_select 0, %s6, %s4
  $region1: #{tpu_custom_call.1} parent=0
    #allocation2 [shape = 'u8[4096]{0}', space=vmem, size = 0x1000, scoped, tag = 'input window, operand 0, single buffered']
    #allocation3 [shape = 's32[1]{0}', space=sflag, size = 0x4, scoped, tag = 'scoped memory for tpu_custom_call.1']
    #allocation4 [shape = 's32[1]{0}', space=sflag, size = 0x4, scoped, tag = 'scoped memory for tpu_custom_call.1']
    #allocation5 [shape = 'u8[36864]{0}', space=vmem, size = 0x9000, scoped, tag = 'input window, operand 1, single buffered']
    #allocation6 [shape = 's32[1]{0}', space=sflag, size = 0x4, scoped, tag = 'scoped memory for tpu_custom_call.1']
    #allocation7 [shape = 'u8[2048]{0}', space=vmem, size = 0x800, scoped, tag = 'input window, operand 2, single buffered']
    #allocation8 [shape = 'u8[512]{0}', space=vmem, size = 0x400, scoped, tag = 'output window, operand 0, single buffered']
    %8 = vsyncpa [#allocation3], 0
    %9 = vsyncpa [#allocation6], 0
    %10 = vsyncpa [#allocation4], 0
    // Predicated region
    $region2: #{tpu_custom_call.1} parent=1 // pred_check
      _
    $region3: #{tpu_custom_call.1} parent=1 // pred_check_branch
      %12 = sbr.rel (0) target = $region5
    $region4: #{tpu_custom_call.1} parent=1 // pred_region
      %s14 = ssub.s32 128, 128
      %15 = vsyncadd [#allocation3], %s14
      %s17 = sshll.u32 [#allocation2], 4
      %s18 = int_to_ptr.vmem [resolvable:$true] %s17
      %20 = dma.hbm_to_vmem [thread:$0]  %s0, 128, %s18, [#allocation3]
    $region5: #{tpu_custom_call.1} parent=1 // pred_fallthru
      _
    // Predicated region
    $region6: #{tpu_custom_call.1} parent=1 // pred_check
      _
    $region7: #{tpu_custom_call.1} parent=1 // pred_check_branch
      %22 = sbr.rel (0) target = $region9
    $region8: #{tpu_custom_call.1} parent=1 // pred_region
      %s24 = ssub.s32 1152, 1152
      %25 = vsyncadd [#allocation6], %s24
      %s26 = sshll.u32 [#allocation5], 4
      %s27 = int_to_ptr.vmem [resolvable:$true] %s26
      %32 = dma.hbm_to_vmem [thread:$0]  %s1, 1152, %s27, [#allocation6], 128, 128, 8
    $region9: #{tpu_custom_call.1} parent=1 // pred_fallthru
      _
    // Predicated region
    $region10: #{tpu_custom_call.1} parent=1 // pred_check
      _
    $region11: #{tpu_custom_call.1} parent=1 // pred_check_branch
      %34 = sbr.rel (0) target = $region13
    $region12: #{tpu_custom_call.1} parent=1 // pred_region
      %s36 = ssub.s32 64, 64
      %37 = vsyncadd [#allocation6], %s36
      %s39 = sshll.u32 [#allocation7], 4
      %s40 = int_to_ptr.vmem [resolvable:$true] %s39
      %42 = dma.hbm_to_vmem [thread:$0]  %s2, 64, %s40, [#allocation6]
    $region13: #{tpu_custom_call.1} parent=1 // pred_fallthru
      _
    // Predicated region
    $region14: #{tpu_custom_call.1} parent=1 // pred_check
      _
    $region15: #{tpu_custom_call.1} parent=1 // pred_check_branch
      %44 = sbr.rel (0) target = $region17
    $region16: #{tpu_custom_call.1} parent=1 // pred_region
      %45 = dma.done [#allocation3], 128
    $region17: #{tpu_custom_call.1} parent=1 // pred_fallthru
      _
    // Predicated region
    $region18: #{tpu_custom_call.1} parent=1 // pred_check
      _
    $region19: #{tpu_custom_call.1} parent=1 // pred_check_branch
      %47 = sbr.rel (0) target = $region21
    $region20: #{tpu_custom_call.1} parent=1 // pred_region
      %48 = dma.done [#allocation6], 1152
    $region21: #{tpu_custom_call.1} parent=1 // pred_fallthru
      _
    // Predicated region
    $region22: #{tpu_custom_call.1} parent=1 // pred_check
      _
    $region23: #{tpu_custom_call.1} parent=1 // pred_check_branch
      %50 = sbr.rel (0) target = $region25
    $region24: #{tpu_custom_call.1} parent=1 // pred_region
      %51 = dma.done [#allocation6], 64
    $region25: #{tpu_custom_call.1} parent=1 // pred_fallthru
      _
    %v52 = vld [vmem:[#allocation5] sm:$0xff]
    %v53 = vld [vmem:[#allocation5 + $0x8] sm:$0xff]
    %v54 = vld [vmem:[#allocation5 + $0x10] sm:$0xff]
    %v55 = vld [vmem:[#allocation5 + $0x18] sm:$0xff]
    %v56 = vld [vmem:[#allocation5 + $0x20] sm:$0xff]
    %v57 = vld [vmem:[#allocation5 + $0x28] sm:$0xff]
    %v58 = vld [vmem:[#allocation5 + $0x30] sm:$0xff]
    %v59 = vld [vmem:[#allocation5 + $0x38] sm:$0xff]
    %v60 = vld [vmem:[#allocation5 + $0x40] sm:$0x1]
    %v61 = vld [vmem:[#allocation5 + $0x41] sm:$0x1]
    %v62 = vld [vmem:[#allocation5 + $0x42] sm:$0x1]
    %v63 = vld [vmem:[#allocation2] sm:$0xff]
    %v64 = vlaneseq
    %v65 = vshrl.u32 %v64, 7
    %v66 = vsub.s32 0, %v65
    %v67 = vrot.slane %v60, %v66
    %vm68 = vcmask 523264
    %v70 = vsel %vm68, %v63, 0
    %72 = vmatprep.subr.mxu0 0.0
    %73 = vmatpush1.msra.mxu0 0.0
    %74 = vmatprep.subr.mxu0 0.0
    %75 = vmatpush1.msra.mxu0 0.0
    %76 = vmatprep.subr.mxu0 0.0
    %77 = vmatpush1.msra.mxu0 0.0
    %78 = vmatprep.subr.mxu0 0.0
    %79 = vmatpush1.msra.mxu0 0.0
    %80 = vmatprep.subr.mxu0 0.0
    %81 = vmatpush1.msra.mxu0 0.0
    %82 = vmatprep.subr.mxu0 0.0
    %83 = vmatpush1.msra.mxu0 0.0
    %84 = vmatprep.subr.mxu0 0.0
    %85 = vmatpush1.msra.mxu0 0.0
    %86 = vmatprep.subr.mxu0 0.0
    %87 = vmatpush1.msra.mxu0 0.0
    %88 = vmatprep.subr.mxu0 0.0
    %89 = vmatpush1.msra.mxu0 %v59
    %90 = vmatprep.subr.mxu0 0.0
    %91 = vmatpush1.msra.mxu0 %v58
    %92 = vmatprep.subr.mxu0 0.0
    %93 = vmatpush1.msra.mxu0 %v57
    %94 = vmatprep.subr.mxu0 0.0
    %95 = vmatpush1.msra.mxu0 %v56
    %96 = vmatprep.subr.mxu0 0.0
    %97 = vmatpush1.msra.mxu0 %v55
    %98 = vmatprep.subr.mxu0 0.0
    %99 = vmatpush1.msra.mxu0 %v54
    %100 = vmatprep.subr.mxu0 0.0
    %101 = vmatpush1.msra.mxu0 %v53
    %102 = vmatprep.subr.mxu0 0.0
    %103 = vmatpush1.msra.mxu0 %v52
    %104 = vmatprep.subr.mxu0 0.0
    %105 = vmatpush2.msra.mxu0 0.0
    %106 = vmatprep.subr.mxu0 0.0
    %107 = vmatpush2.msra.mxu0 0.0
    %108 = vmatprep.subr.mxu0 0.0
    %109 = vmatpush2.msra.mxu0 0.0
    %110 = vmatprep.subr.mxu0 0.0
    %111 = vmatpush2.msra.mxu0 0.0
    %112 = vmatprep.subr.mxu0 0.0
    %113 = vmatpush2.msra.mxu0 0.0
    %114 = vmatprep.subr.mxu0 0.0
    %115 = vmatpush2.msra.mxu0 0.0
    %116 = vmatprep.subr.mxu0 0.0
    %117 = vmatpush2.msra.mxu0 0.0
    %118 = vmatprep.subr.mxu0 0.0
    %119 = vmatpush2.msra.mxu0 0.0
    %120 = vmatprep.subr.mxu0 0.0
    %121 = vmatpush2.msra.mxu0 0.0
    %122 = vmatprep.subr.mxu0 0.0
    %123 = vmatpush2.msra.mxu0 0.0
    %124 = vmatprep.subr.mxu0 0.0
    %125 = vmatpush2.msra.mxu0 0.0
    %126 = vmatprep.subr.mxu0 0.0
    %127 = vmatpush2.msra.mxu0 0.0
    %128 = vmatprep.subr.mxu0 0.0
    %129 = vmatpush2.msra.mxu0 0.0
    %130 = vmatprep.subr.mxu0 0.0
    %131 = vmatpush2.msra.mxu0 0.0
    %132 = vmatprep.subr.mxu0 0.0
    %133 = vmatpush2.msra.mxu0 0.0
    %134 = vmatprep.subr.mxu0 0.0
    %135 = vmatpush2.msra.mxu0 0.0
    %136 = vmatprep.mubr.f32.mxu0 0.0
    %137 = vmatmul.mubr.f32.gmra.mxu0 %v70
    %v138 = vpop.f32.mrf.mxu0
    %v139 = vadd.f32 %v67, %v138
    %v140 = vpop.f32.mrf.mxu0
    %141 = vdwg.mxu0
    %v142 = vmul.f32 %v139, %v139
    %143 = vadd.xlane.f32.xlu0 %v142
    %v144 = vpop.xlane.xlu0 %143
    %v145 = vmax.f32 %v144, 1e-24
    %v146 = vrsqrt.pop %v145
    %v147 = vmul.f32 %v139, %v146
    %v148 = vlaneseq
    %v149 = vshrl.u32 %v148, 7
    %v150 = vsub.s32 0, %v149
    %v151 = vrot.slane %v61, %v150
    %v152 = vmul.f32 %v147, %v151
    %153 = vadd.xlane.f32.xlu0 %v152
    %v154 = vpop.xlane.xlu0 %153
    %v155 = vld [vmem:[#allocation7] sm:$0x1]
    %v156 = vld [vmem:[#allocation7 + $0x1] sm:$0x1]
    %v157 = vld [vmem:[#allocation7 + $0x2] sm:$0x1]
    %v159 = vlaneseq
    %v160 = vshrl.u32 %v159, 7
    %v161 = vlaneseq
    %v162 = vshrl.u32 %v161, 7
    %v163 = vsub.s32 0, %v162
    %v164 = vrot.slane %v155, %v163
    %vm165 = vcmp.eq.s32.totalorder %v160, %v164
    %v166 = vsel %vm165, 1, 0
    %v167 = vcvt.s32.f32 %v166
    %v168 = vlaneseq
    %v169 = vshrl.u32 %v168, 7
    %v170 = vsub.s32 0, %v169
    %v171 = vrot.slane %v156, %v170
    %vm172 = vcmp.eq.s32.totalorder %v160, %v171
    %v173 = vsel %vm172, 1, 0
    %v174 = vcvt.s32.f32 %v173
    %v175 = vlaneseq
    %v176 = vshrl.u32 %v175, 7
    %v177 = vsub.s32 0, %v176
    %v178 = vrot.slane %v157, %v177
    %v179 = vmul.f32 %v174, %v178
    %180 = vadd.xlane.f32.xlu0 %v179
    %v181 = vpop.xlane.xlu0 %180
    %v182 = vadd.f32 %v181, 1.0
    %vm183 = vcmp.gt.f32.partialorder %v182, 0.0
    %v184 = vrsqrt.pop %v182
    %v185 = vsel %vm183, %v184, 0.0
    %v186 = vmul.f32 %v185, %v154
    %v187 = vmul.f32 %v167, %v186
    %v188 = vrot.slane %v187, 4
    %v189 = vadd.f32 %v187, %v188
    %v190 = vrot.slane %v189, 2
    %v191 = vadd.f32 %v189, %v190
    %v192 = vrot.slane %v191, 1
    %v193 = vadd.f32 %v191, %v192
    %v194 = vmul.f32 %v179, %v193
    %195 = vadd.xlane.f32.xlu0 %v194
    %v196 = vpop.xlane.xlu0 %195
    %v197 = vadd.f32 %v196, %v186
    %v198 = vmul.f32 %v185, %v197
    %v199 = vrot.slane %v198, 4
    %v200 = vadd.f32 %v198, %v199
    %v201 = vrot.slane %v200, 2
    %v202 = vadd.f32 %v200, %v201
    %v203 = vrot.slane %v202, 1
    %v204 = vadd.f32 %v202, %v203
    %v205 = vmul.f32 %v204, 0.125
    %v206 = vadd.f32 %v205, %v62
    %vm207 = vcmask 0
    %208 = vst.msk [vmem:[#allocation8] sm:$0x1] %vm207, %v206
    // Predicated region
    $region26: #{tpu_custom_call.1} parent=1 // pred_check
      _
    $region27: #{tpu_custom_call.1} parent=1 // pred_check_branch
      %210 = sbr.rel (0) target = $region29
    $region28: #{tpu_custom_call.1} parent=1 // pred_region
      %s212 = ssub.s32 16, 16
      %213 = vsyncadd [#allocation4], %s212
      %s215 = sshll.u32 [#allocation8], 4
      %s216 = int_to_ptr.vmem [resolvable:$true] %s215
      %218 = dma.vmem_to_hbm [thread:$0]  %s216, 16, %s3, [#allocation4]
    $region29: #{tpu_custom_call.1} parent=1 // pred_fallthru
      _
    // Predicated region
    $region30: #{tpu_custom_call.1} parent=1 // pred_check
      _
    $region31: #{tpu_custom_call.1} parent=1 // pred_check_branch
      %220 = sbr.rel (0) target = $region33
    $region32: #{tpu_custom_call.1} parent=1 // pred_region
      %221 = dma.done [#allocation4], 16
    $region33: #{tpu_custom_call.1} parent=1 // pred_fallthru
      _
    %222 = vsyncpa [#allocation3], 1
    %223 = vsyncpa [#allocation6], 1
    %224 = vsyncpa [#allocation4], 1

</llo_original>
